<compile_context>
chip_gen: v6e
topology: v6e:2x2x1
jax: 0.10.0
libtpu: 0.0.40
codegen_flags: <defaults>
</compile_context>

<pallas_src>
import functools

import jax
import jax.numpy as jnp
from jax.experimental import pallas as pl
from jax.experimental.pallas import tpu as pltpu

EPS = 1e-5


def _round_up(n, m):
    return (n + m - 1) // m * m


def _physical_vmem_bytes():
    try:
        info = pltpu.get_tpu_info()
        v = getattr(info, "vmem_capacity_bytes", None)
        if v:
            return int(v)
    except Exception:
        pass
    return 64 << 20  # conservative fallback (v7x)


def _pick_tn(cols128, max_t):
    """Largest tile width (in 128-lane units) <= max_t that divides cols128."""
    max_t = max(1, min(max_t, cols128))
    for t in range(max_t, 0, -1):
        if cols128 % t == 0:
            return t * 128
    return 128


def _prenorm_linear_kernel(x_ref, w_ref, bias_ref, o_ref, xn_ref, *, d_true):
    # x_ref    : (TR, Dp)   rows to normalize (zero-padded lanes beyond d_true)
    # w_ref    : (Dp, TN)   folded weight tile (gamma pre-multiplied), MXU dtype
    # bias_ref : (1, TN)    folded bias tile (f32)
    # o_ref    : (TR, TN)
    # xn_ref   : (TR, Dp)   persistent scratch: normalized rows, MXU dtype
    @pl.when(pl.program_id(1) == 0)
    def _():
        x = x_ref[...].astype(jnp.float32)
        dp = x.shape[-1]
        inv_d = jnp.float32(1.0 / d_true)
        mean = jnp.sum(x, axis=-1, keepdims=True) * inv_d  # padded lanes are zero
        centered = x - mean
        sq = jnp.sum(centered * centered, axis=-1, keepdims=True)
        if dp != d_true:
            # Padded lanes of x are zero, so centered there == -mean.
            # Closed-form correction instead of an iota mask.
            sq = sq - jnp.float32(dp - d_true) * (mean * mean)
        var = sq * inv_d
        # Padded lanes of xn are non-zero, but the folded weight rows there are
        # zero, so they contribute nothing to the matmul.
        xn_ref[...] = (centered * jax.lax.rsqrt(var + EPS)).astype(xn_ref.dtype)

    out = jnp.dot(xn_ref[...], w_ref[...], preferred_element_type=jnp.float32)
    o_ref[...] = (out + bias_ref[...]).astype(o_ref.dtype)


def prenorm_linear(x, gamma, beta, w, bias, *, row_tile=256, col_tile=512,
                   mxu_dtype=None):
    """PreNorm(dim, Linear): Linear(LayerNorm(x)).

    x: (B, S, D); gamma/beta: (D,); w: (D_out, D) [torch Linear layout]; bias: (D_out,).
    mxu_dtype: dtype fed to the MXU (default bf16 fast path, f32 accumulation).
    """
    B, S, D = x.shape
    D_out = w.shape[0]
    N = B * S

    if mxu_dtype is None:
        mxu_dtype = jnp.bfloat16  # bf16 MXU fast path (f32 acc) on all generations
    mxu_dtype = jnp.dtype(mxu_dtype)

    # --- lane-dense padding of hidden dims -----------------------------------
    Dp = _round_up(D, 128)
    Dop = _round_up(D_out, 128)
    cols128 = Dop // 128

    # Output-column tile: largest 128-multiple <= col_tile dividing Dop
    # -> zero wasted MXU columns.
    TN = _pick_tn(cols128, max(1, col_tile // 128))
    n_col = Dop // TN

    # --- VMEM-aware row-tile selection ----------------------------------------
    phys_vmem = _physical_vmem_bytes()
    budget = int(0.85 * phys_vmem)
    x_bytes = x.dtype.itemsize
    out_bytes = x.dtype.itemsize
    w_bytes = mxu_dtype.itemsize

    def _est(tr, tn, ncol):
        wbuf = 1 if ncol == 1 else 2
        return (2 * tr * Dp * x_bytes            # x, double-buffered
                + 2 * tr * tn * out_bytes        # out, double-buffered
                + wbuf * (Dp * tn * w_bytes + tn * 4)   # weight + bias tiles
                + tr * Dp * w_bytes              # xn scratch
                + 3 * tr * Dp * 4                # f32 temporaries (x, centered, xn)
                + tr * tn * 4)                   # f32 accumulator

    TR = _round_up(min(row_tile, _round_up(max(N, 1), 8)), 8)
    # Grow TR while rows exist and VMEM allows: weight re-stream traffic ~ 1/TR.
    while TR < 512 and N >= 2 * TR:
        new_tr = min(2 * TR, 512)
        if _est(new_tr, TN, n_col) > budget:
            break
        TR = new_tr
    # Shrink TR if over budget (keeps double-buffered pipelining on v7x's 64 MiB).
    while _est(TR, TN, n_col) > budget and TR > 8:
        new_tr = max(8, _round_up(TR // 2, 8))
        if new_tr == TR:
            break
        TR = new_tr
    # Shrink TN (still dividing Dop) if it's the weight tile that doesn't fit.
    while _est(TR, TN, n_col) > budget and TN > 128:
        TN = _pick_tn(cols128, (TN // 128) - 1)
        n_col = Dop // TN

    n_row = pl.cdiv(N, TR)
    # Give both TensorCores work on (1,1) grids (v7x megacore).
    if n_row == 1 and n_col == 1 and N > 8:
        TR = _round_up(pl.cdiv(N, 2), 8)
        n_row = pl.cdiv(N, TR)

    # --- fold LayerNorm affine into the linear layer (wrapper-side, one-off) --
    g32 = gamma.astype(jnp.float32)
    b32 = beta.astype(jnp.float32)
    w32 = w.astype(jnp.float32)
    wT_folded = g32[:, None] * w32.T                        # (D, D_out), f32 fold
    bias_folded = b32 @ w32.T + bias.astype(jnp.float32)    # (D_out,), f32
    wT = jnp.pad(wT_folded, ((0, Dp - D), (0, Dop - D_out))).astype(mxu_dtype)
    bias2 = jnp.pad(bias_folded, (0, Dop - D_out)).reshape(1, Dop)

    # No row padding of x: Pallas masks the partial last row block.
    x2 = x.reshape(N, D)
    if Dp != D:
        x2 = jnp.pad(x2, ((0, 0), (0, Dp - D)))

    # Constant-index weight/bias are single-buffered when n_col == 1.
    w_kwargs = dict(pipeline_mode=pl.Buffered(1)) if n_col == 1 else {}

    est = _est(TR, TN, n_col)
    vmem_limit = int(min(max(est + (8 << 20), 32 << 20), int(0.9 * phys_vmem)))

    kernel = functools.partial(_prenorm_linear_kernel, d_true=D)

    out = pl.pallas_call(
        kernel,
        out_shape=jax.ShapeDtypeStruct((N, Dop), x.dtype),
        grid=(n_row, n_col),
        in_specs=[
            pl.BlockSpec((TR, Dp), lambda i, j: (i, 0)),
            pl.BlockSpec((Dp, TN), lambda i, j: (0, j), **w_kwargs),
            pl.BlockSpec((1, TN), lambda i, j: (0, j), **w_kwargs),
        ],
        out_specs=pl.BlockSpec((TR, TN), lambda i, j: (i, j)),
        scratch_shapes=[pltpu.VMEM((TR, Dp), mxu_dtype)],
        compiler_params=pltpu.CompilerParams(
            # column axis is "arbitrary": the cached xn must be produced at j==0
            # before the remaining column tiles of the same row tile are visited.
            dimension_semantics=("parallel", "arbitrary"),
            vmem_limit_bytes=vmem_limit,
        ),
    )(x2, wT, bias2)

    return out[:, :D_out].reshape(B, S, D_out)


def prenorm_linear_ref(x, gamma, beta, w, bias):
    xf = x.astype(jnp.float32)
    mean = jnp.mean(xf, axis=-1, keepdims=True)
    var = jnp.mean((xf - mean) ** 2, axis=-1, keepdims=True)
    xn = (xf - mean) / jnp.sqrt(var + EPS)
    y = xn * gamma.astype(jnp.float32) + beta.astype(jnp.float32)
    out = y @ w.astype(jnp.float32).T + bias.astype(jnp.float32)
    return out.astype(x.dtype)


if __name__ == "__main__":
    B, S, D = 2, 8, 32          # batch, seq, hidden dim
    D_out = D                    # fn = Linear(dim, dim)
    key = jax.random.PRNGKey(0)
    kx, kw, kb, kg, kbeta = jax.random.split(key, 5)

    x = jax.random.normal(kx, (B, S, D), dtype=jnp.float32)

    # Deterministic, non-trivial params so the gamma/beta fold is exercised.
    gamma = 1.0 + 0.1 * jax.random.normal(kg, (D,), dtype=jnp.float32)
    beta = 0.05 * jax.random.normal(kbeta, (D,), dtype=jnp.float32)
    w = jax.random.normal(kw, (D_out, D), dtype=jnp.float32) * (1.0 / jnp.sqrt(D))
    bias = jax.random.normal(kb, (D_out,), dtype=jnp.float32) * 0.01

    ref = prenorm_linear_ref(x, gamma, beta, w, bias)

    # f32 MXU path: tight tolerance against the f32 reference.
    out_f32 = prenorm_linear(x, gamma, beta, w, bias, mxu_dtype=jnp.float32)
    out_f32 = jax.block_until_ready(out_f32)
    assert out_f32.shape == (B, S, D_out)
    assert jnp.allclose(out_f32, ref, atol=1e-4, rtol=1e-4)

    # Default bf16 MXU fast path: loose tolerance (bf16 mantissa).
    out_bf16 = prenorm_linear(x, gamma, beta, w, bias)
    out_bf16 = jax.block_until_ready(out_bf16)
    assert out_bf16.shape == (B, S, D_out)
    assert jnp.allclose(out_bf16, ref, atol=5e-2, rtol=5e-2)

    print("KERNEL_OK")
</pallas_src>

<mosaic_0001>
module attributes {stable_mosaic.version = 11 : i64} {
  func.func @_prenorm_linear_kernel(%arg0: i32, %arg1: i32, %arg2: memref<8x128xf32, #tpu.memory_space<vmem>>, %arg3: memref<128x128xf32, #tpu.memory_space<vmem>>, %arg4: memref<1x128xf32, #tpu.memory_space<vmem>>, %arg5: memref<8x128xf32, #tpu.memory_space<vmem>>, %arg6: memref<8x128xf32, #tpu.memory_space<vmem>>) attributes {dimension_semantics = [#tpu.dimension_semantics<parallel>, #tpu.dimension_semantics<arbitrary>], iteration_bounds = array<i64: 2, 1>, scalar_prefetch = 0 : i64, scratch_operands = 1 : i64, tpu.core_type = #tpu.core_type<tc>, window_params = [{transform_indices = @transform_0, window_bounds = array<i64: 8, 128>}, {pipeline_mode = #tpu.pipeline_mode<synchronous>, transform_indices = @transform_1, window_bounds = array<i64: 128, 128>}, {pipeline_mode = #tpu.pipeline_mode<synchronous>, transform_indices = @transform_2, window_bounds = array<i64: 1, 128>}, {transform_indices = @transform_3, window_bounds = array<i64: 8, 128>}]} {
    %c0_i32 = arith.constant 0 : i32
    %0 = arith.cmpi eq, %arg1, %c0_i32 : i32
    %1 = arith.extui %0 : i1 to i32
    %c0_i32_0 = arith.constant 0 : i32
    %2 = arith.cmpi ne, %1, %c0_i32_0 : i32
    scf.if %2 {
      %c0_8 = arith.constant 0 : index
      %c0_9 = arith.constant 0 : index
      %10 = vector.load %arg2[%c0_8, %c0_9] : memref<8x128xf32, #tpu.memory_space<vmem>>, vector<8x128xf32>
      %cst_10 = arith.constant dense<0.000000e+00> : vector<8xf32>
      %11 = vector.multi_reduction <add>, %10, %cst_10 [1] : vector<8x128xf32> to vector<8xf32>
      %12 = vector.shape_cast %11 : vector<8xf32> to vector<8x1xf32>
      %cst_11 = arith.constant 3.125000e-02 : f32
      %13 = vector.broadcast %cst_11 : f32 to vector<8x1xf32>
      %14 = arith.mulf %12, %13 : vector<8x1xf32>
      %15 = vector.broadcast %14 : vector<8x1xf32> to vector<8x128xf32>
      %16 = arith.subf %10, %15 : vector<8x128xf32>
      %17 = arith.mulf %16, %16 : vector<8x128xf32>
      %cst_12 = arith.constant dense<0.000000e+00> : vector<8xf32>
      %18 = vector.multi_reduction <add>, %17, %cst_12 [1] : vector<8x128xf32> to vector<8xf32>
      %19 = vector.shape_cast %18 : vector<8xf32> to vector<8x1xf32>
      %20 = arith.mulf %14, %14 : vector<8x1xf32>
      %cst_13 = arith.constant 9.600000e+01 : f32
      %21 = vector.broadcast %cst_13 : f32 to vector<8x1xf32>
      %22 = arith.mulf %21, %20 : vector<8x1xf32>
      %23 = arith.subf %19, %22 : vector<8x1xf32>
      %cst_14 = arith.constant 3.125000e-02 : f32
      %24 = vector.broadcast %cst_14 : f32 to vector<8x1xf32>
      %25 = arith.mulf %23, %24 : vector<8x1xf32>
      %cst_15 = arith.constant 9.99999974E-6 : f32
      %26 = vector.broadcast %cst_15 : f32 to vector<8x1xf32>
      %27 = arith.addf %25, %26 : vector<8x1xf32>
      %28 = math.rsqrt %27 : vector<8x1xf32>
      %29 = vector.broadcast %28 : vector<8x1xf32> to vector<8x128xf32>
      %30 = arith.mulf %16, %29 : vector<8x128xf32>
      %c0_16 = arith.constant 0 : index
      %c0_17 = arith.constant 0 : index
      %31 = vector.load %arg6[%c0_16, %c0_17] : memref<8x128xf32, #tpu.memory_space<vmem>>, vector<8x128xf32>
      tpu.vector_store %arg6[%c0_16, %c0_17], %30 {strides = array<i32>} : memref<8x128xf32, #tpu.memory_space<vmem>>, vector<8x128xf32>,
    } else {
    }
    %c0 = arith.constant 0 : index
    %c0_1 = arith.constant 0 : index
    %3 = vector.load %arg6[%c0, %c0_1] : memref<8x128xf32, #tpu.memory_space<vmem>>, vector<8x128xf32>
    %c0_2 = arith.constant 0 : index
    %c0_3 = arith.constant 0 : index
    %4 = vector.load %arg3[%c0_2, %c0_3] : memref<128x128xf32, #tpu.memory_space<vmem>>, vector<128x128xf32>
    %cst = arith.constant dense<0.000000e+00> : vector<8x128xf32>
    %5 = tpu.matmul %3, %4, %cst {dimension_numbers = #tpu.dot_dimension_numbers<[1], [0], [0], [1], [0, 0, 1, 1], [], []>} : vector<8x128xf32>, vector<128x128xf32>, vector<8x128xf32> -> vector<8x128xf32>
    %c0_4 = arith.constant 0 : index
    %c0_5 = arith.constant 0 : index
    %6 = vector.load %arg4[%c0_4, %c0_5] : memref<1x128xf32, #tpu.memory_space<vmem>>, vector<1x128xf32>
    %7 = vector.broadcast %6 : vector<1x128xf32> to vector<8x128xf32>
    %8 = arith.addf %5, %7 : vector<8x128xf32>
    %c0_6 = arith.constant 0 : index
    %c0_7 = arith.constant 0 : index
    %9 = vector.load %arg5[%c0_6, %c0_7] : memref<8x128xf32, #tpu.memory_space<vmem>>, vector<8x128xf32>
    tpu.vector_store %arg5[%c0_6, %c0_7], %8 {strides = array<i32>} : memref<8x128xf32, #tpu.memory_space<vmem>>, vector<8x128xf32>,
    return
  }
  func.func @transform_0(%arg0: i32, %arg1: i32) -> (i32, i32) {
    %c0_i32 = arith.constant 0 : i32
    %c0_i32_0 = arith.constant 0 : i32
    return %arg0, %c0_i32 : i32, i32
  }
  func.func @transform_1(%arg0: i32, %arg1: i32) -> (i32, i32) {
    %c0_i32 = arith.constant 0 : i32
    %c0_i32_0 = arith.constant 0 : i32
    return %c0_i32, %arg1 : i32, i32
  }
  func.func @transform_2(%arg0: i32, %arg1: i32) -> (i32, i32) {
    %c0_i32 = arith.constant 0 : i32
    %c0_i32_0 = arith.constant 0 : i32
    return %c0_i32, %arg1 : i32, i32
  }
  func.func @transform_3(%arg0: i32, %arg1: i32) -> (i32, i32) {
    %c0_i32 = arith.constant 0 : i32
    return %arg0, %arg1 : i32, i32
  }
}

</mosaic_0001>

<llo_original>
// kernel: tpu_custom_call.1
$region0: #{tpu_custom_call.1}
  #allocation0 [shape = 'u32[]', space=smem, size = 0x4, offset = 0x4, fixed_abs, tag = 'smem constant byte address 0x4 - core index']
  #allocation1 [shape = 'u32[144,128]{1,0:T(1,128)}', space=vmem, size = 0x12000, scoped, tag = 'internal scratch']
  #allocation2 [shape = 'f32[8,128]{1,0:T(8,128)}', space=vmem, size = 0x1000, scoped, tag = 'scratch operand']
  %s0 = inlined_call_operand.hbm [shape: f32[16,128], index: 0, kind: input, shape index: {}]
  %s1 = inlined_call_operand.hbm [shape: f32[128,128], index: 1, kind: input, shape index: {}]
  %s2 = inlined_call_operand.vmem [shape: f32[1,128], index: 2, kind: input, shape index: {}]
  %s3 = inlined_call_operand.hbm [shape: f32[16,128], index: 3, kind: output, shape index: {}]
  %s4 = sld [smem:[#allocation0]]
  $region57: #{tpu_custom_call.1} parent=0
    _
  %s6 = ssub.s32 1, %s4
  %s7 = scalar_select 0, %s6, %s4
  $region1: #{tpu_custom_call.1} parent=0
    #allocation3 [shape = 'u8[8192]{0}', space=vmem, size = 0x2000, scoped, tag = 'input window, operand 0']
    #allocation4 [shape = 's32[2]{0}', space=sflag, size = 0x8, scoped, tag = 'scoped memory for tpu_custom_call.1']
    #allocation5 [shape = 's32[2]{0}', space=sflag, size = 0x8, scoped, tag = 'scoped memory for tpu_custom_call.1']
    #allocation6 [shape = 'u8[65536]{0}', space=vmem, size = 0x10000, scoped, tag = 'input window, operand 1, single buffered']
    #allocation7 [shape = 's32[1]{0}', space=sflag, size = 0x4, scoped, tag = 'scoped memory for tpu_custom_call.1']
    #allocation8 [shape = 'u8[8192]{0}', space=vmem, size = 0x2000, scoped, tag = 'output window, operand 0']
    %8 = vsyncpa [#allocation4], 0
    %s9 = scalar_lea.sflag [#allocation4], 1
    %10 = vsyncpa %s9, 0
    %11 = vsyncpa [#allocation7], 0
    %12 = vsyncpa [#allocation5], 0
    %s13 = scalar_lea.sflag [#allocation5], 1
    %14 = vsyncpa %s13, 0
    loop: start=0, step=1, limit=4
    $region2: #{tpu_custom_call.1} parent=1 // loop_pre_header
      _
    $region3: #{tpu_custom_call.1} parent=1 // loop_header
      %s16 = sphi 0, %s20
      %p17 = scmp.ge.s32.totalorder %s16, 4
      %s23 = sphi 0, %s35
      %s24 = sphi 0, %s31
      %s25 = sphi 0, %s23
      %s26 = sphi 0, %s24
      %s27 = sphi 0, %s25
      %s28 = sphi 0, %s26
      %s38 = sphi 0, %s40
      %s41 = sphi 0, %s38
      %s42 = sphi 0, %s41
      %s58 = sphi 0, %s42
      %s64 = sphi 0, %s66
      %s67 = sphi 0, %s64
      %s68 = sphi 0, %s67
      %s84 = sphi 0, %s68
      %s90 = sphi 0, %s92
      %s93 = sphi 0, %s90
      %s94 = sphi 0, %s93
      %s110 = sphi 0, %s94
      %s118 = sphi 0, %s120
      %s121 = sphi 0, %s118
      %s122 = sphi 0, %s121
      %s138 = sphi 0, %s122
    $region4: #{tpu_custom_call.1} parent=1 // loop_header_branch
      %19 = sbr.rel (%p17) target = $region8
    $region5: #{tpu_custom_call.1} parent=1 // loop_body
      %s21 = ssub.s32 %s16, 1
      %s22 = ssub.s32 %s16, 2
      %s29 = sadd.s32 1, %s24
      %p30 = scmp.ge.s32.totalorder %s29, 1
      %s31 = scalar_select %p30, 0, %s29
      %s32 = sadd.s32 1, %s23
      %s33 = scalar_select %p30, %s32, %s23
      %p34 = scmp.ge.s32.totalorder %s33, 2
      %s35 = scalar_select %p34, 0, %s33
      %s36 = ssub.s32 %s23, %s35
      %p37 = scmp.eq.s32.totalorder %s36, 0
      %s39 = sadd.s32 %s38, 1
      %s40 = scalar_select %p37, %s38, %s39
      %p43 = pneg %p37
      %p44 = scmp.eq.s32.totalorder %s16, 1
      %p45 = por %p43, %p44
      %p46 = scmp.ne.s32.totalorder %s38, %s41
      %p47 = scmp.eq.s32.totalorder %s16, 0
      %p48 = por %p46, %p47
      %p49 = scmp.ne.s32.totalorder %s38, %s41
      %p50 = scmp.eq.s32.totalorder %s21, 1
      %p51 = por %p49, %p50
      %p52 = scmp.ne.s32.totalorder %s41, %s42
      %p53 = scmp.eq.s32.totalorder %s21, 0
      %p54 = por %p52, %p53
      %p55 = scmp.ne.s32.totalorder %s41, %s42
      %p56 = scmp.eq.s32.totalorder %s22, 1
      %p57 = por %p55, %p56
      %p59 = scmp.ne.s32.totalorder %s42, %s58
      %p60 = scmp.eq.s32.totalorder %s22, 0
      %p61 = por %p59, %p60
      %s62 = ssub.s32 %s24, %s31
      %p63 = scmp.eq.s32.totalorder %s62, 0
      %s65 = sadd.s32 %s64, 1
      %s66 = scalar_select %p63, %s64, %s65
      %p69 = pneg %p63
      %p70 = scmp.eq.s32.totalorder %s16, 1
      %p71 = por %p69, %p70
      %p72 = scmp.ne.s32.totalorder %s64, %s67
      %p73 = scmp.eq.s32.totalorder %s16, 0
      %p74 = por %p72, %p73
      %p75 = scmp.ne.s32.totalorder %s64, %s67
      %p76 = scmp.eq.s32.totalorder %s21, 1
      %p77 = por %p75, %p76
      %p78 = scmp.ne.s32.totalorder %s67, %s68
      %p79 = scmp.eq.s32.totalorder %s21, 0
      %p80 = por %p78, %p79
      %p81 = scmp.ne.s32.totalorder %s67, %s68
      %p82 = scmp.eq.s32.totalorder %s22, 1
      %p83 = por %p81, %p82
      %p85 = scmp.ne.s32.totalorder %s68, %s84
      %p86 = scmp.eq.s32.totalorder %s22, 0
      %p87 = por %p85, %p86
      %s88 = ssub.s32 %s24, %s31
      %p89 = scmp.eq.s32.totalorder %s88, 0
      %s91 = sadd.s32 %s90, 1
      %s92 = scalar_select %p89, %s90, %s91
      %p95 = pneg %p89
      %p96 = scmp.eq.s32.totalorder %s16, 1
      %p97 = por %p95, %p96
      %p98 = scmp.ne.s32.totalorder %s90, %s93
      %p99 = scmp.eq.s32.totalorder %s16, 0
      %p100 = por %p98, %p99
      %p101 = scmp.ne.s32.totalorder %s90, %s93
      %p102 = scmp.eq.s32.totalorder %s21, 1
      %p103 = por %p101, %p102
      %p104 = scmp.ne.s32.totalorder %s93, %s94
      %p105 = scmp.eq.s32.totalorder %s21, 0
      %p106 = por %p104, %p105
      %p107 = scmp.ne.s32.totalorder %s93, %s94
      %p108 = scmp.eq.s32.totalorder %s22, 1
      %p109 = por %p107, %p108
      %p111 = scmp.ne.s32.totalorder %s94, %s110
      %p112 = scmp.eq.s32.totalorder %s22, 0
      %p113 = por %p111, %p112
      %s114 = ssub.s32 %s23, %s35
      %s115 = ssub.s32 %s24, %s31
      %s116 = sor.u32 %s114, %s115
      %p117 = scmp.eq.s32.totalorder %s116, 0
      %s119 = sadd.s32 %s118, 1
      %s120 = scalar_select %p117, %s118, %s119
      %p123 = pneg %p117
      %p124 = scmp.eq.s32.totalorder %s16, 1
      %p125 = por %p123, %p124
      %p126 = scmp.ne.s32.totalorder %s118, %s121
      %p127 = scmp.eq.s32.totalorder %s16, 0
      %p128 = por %p126, %p127
      %p129 = scmp.ne.s32.totalorder %s118, %s121
      %p130 = scmp.eq.s32.totalorder %s21, 1
      %p131 = por %p129, %p130
      %p132 = scmp.ne.s32.totalorder %s121, %s122
      %p133 = scmp.eq.s32.totalorder %s21, 0
      %p134 = por %p132, %p133
      %p135 = scmp.ne.s32.totalorder %s121, %s122
      %p136 = scmp.eq.s32.totalorder %s22, 1
      %p137 = por %p135, %p136
      %p139 = scmp.ne.s32.totalorder %s122, %s138
      %p140 = scmp.eq.s32.totalorder %s22, 0
      %p141 = por %p139, %p140
      %p142 = scmp.le.s32.totalorder 1, %s16
      %p143 = scmp.lt.s32.totalorder %s16, 3
      %p144 = pnand %p142, %p143
      %p145 = pneg %p144
      // Predicated region
      $region9: #{tpu_custom_call.1} parent=5 // pred_check
        _
      $region10: #{tpu_custom_call.1} parent=5 // pred_check_branch
        %147 = sbr.rel (%p144) target = $region12
      $region11: #{tpu_custom_call.1} parent=5 // pred_region
        %s148 = ssub.s32 %s16, 1
        // Predicated region
        $region13: #{tpu_custom_call.1} parent=11 // pred_check
          %p149 = pneg %p80
        $region14: #{tpu_custom_call.1} parent=11 // pred_check_branch
          %151 = sbr.rel (%p149) target = $region16
        $region15: #{tpu_custom_call.1} parent=11 // pred_region
          %s153 = ssub.s32 2048, 2048
          %154 = vsyncadd [#allocation7], %s153
          %s155 = smul.addr %s26, 128
          %s156 = scalar_lea.hbm %s1, %s155
          %s157 = sshll.u32 [#allocation6], 4
          %s158 = int_to_ptr.vmem [resolvable:$true] %s157
          %163 = dma.hbm_to_vmem [thread:$0]  %s156, 2048, %s158, [#allocation7], 128, 128, 8
        $region16: #{tpu_custom_call.1} parent=11 // pred_fallthru
          _
        // Predicated region
        $region17: #{tpu_custom_call.1} parent=11 // pred_check
          %p164 = pneg %p106
        $region18: #{tpu_custom_call.1} parent=11 // pred_check_branch
          %166 = sbr.rel (%p164) target = $region20
        $region19: #{tpu_custom_call.1} parent=11 // pred_region
          %p167 = scmp.lt.s32.totalorder %s26, 0
          %s168 = scalar_select %p167, %s26, 0
          %s169 = scalar_lea.vmem %s2, %s168
        $region20: #{tpu_custom_call.1} parent=11 // pred_fallthru
          _
      $region12: #{tpu_custom_call.1} parent=5 // pred_fallthru
        _
      %p170 = scmp.lt.s32.totalorder %s16, 2
      // Predicated region
      $region21: #{tpu_custom_call.1} parent=5 // pred_check
        %p171 = pneg %p170
      $region22: #{tpu_custom_call.1} parent=5 // pred_check_branch
        %173 = sbr.rel (%p171) target = $region24
      $region23: #{tpu_custom_call.1} parent=5 // pred_region
        // Predicated region
        $region25: #{tpu_custom_call.1} parent=23 // pred_check
          %p174 = pneg %p48
        $region26: #{tpu_custom_call.1} parent=23 // pred_check_branch
          %176 = sbr.rel (%p174) target = $region28
        $region27: #{tpu_custom_call.1} parent=23 // pred_region
          %s177 = sand.u32 %s38, 1
          %s178 = scalar_lea.sflag [#allocation4], %s177
          %s179 = sand.u32 %s38, 1
          %s180 = smul.addr %s179, 8
          %s181 = scalar_lea.vmem [#allocation3], %s180
          %s183 = ssub.s32 128, 128
          %184 = vsyncadd %s178, %s183
          %s185 = smul.addr %s23, 128
          %s186 = scalar_lea.hbm %s0, %s185
          %s188 = sshll.u32 %s181, 4
          %s189 = int_to_ptr.vmem [resolvable:$true] %s188
          %191 = dma.hbm_to_vmem [thread:$0]  %s186, 128, %s189, %s178
        $region28: #{tpu_custom_call.1} parent=23 // pred_fallthru
          _
      $region24: #{tpu_custom_call.1} parent=5 // pred_fallthru
        _
      %p192 = scmp.le.s32.totalorder 1, %s16
      %p193 = scmp.lt.s32.totalorder %s16, 3
      %p194 = pnand %p192, %p193
      %p195 = pneg %p194
      // Predicated region
      $region29: #{tpu_custom_call.1} parent=5 // pred_check
        _
      $region30: #{tpu_custom_call.1} parent=5 // pred_check_branch
        %197 = sbr.rel (%p194) target = $region32
      $region31: #{tpu_custom_call.1} parent=5 // pred_region
        %s198 = ssub.s32 %s16, 1
        %s199 = sand.u32 %s41, 1
        %s200 = scalar_lea.sflag [#allocation4], %s199
        %s201 = sand.u32 %s41, 1
        %s202 = smul.addr %s201, 8
        %s203 = scalar_lea.vmem [#allocation3], %s202
        // Predicated region
        $region33: #{tpu_custom_call.1} parent=31 // pred_check
          %p204 = pneg %p54
        $region34: #{tpu_custom_call.1} parent=31 // pred_check_branch
          %206 = sbr.rel (%p204) target = $region36
        $region35: #{tpu_custom_call.1} parent=31 // pred_region
          %207 = dma.done %s200, 128
        $region36: #{tpu_custom_call.1} parent=31 // pred_fallthru
          _
        // Predicated region
        $region37: #{tpu_custom_call.1} parent=31 // pred_check
          %p208 = pneg %p80
        $region38: #{tpu_custom_call.1} parent=31 // pred_check_branch
          %210 = sbr.rel (%p208) target = $region40
        $region39: #{tpu_custom_call.1} parent=31 // pred_region
          %211 = dma.done [#allocation7], 2048
        $region40: #{tpu_custom_call.1} parent=31 // pred_fallthru
          _
        %s212 = sand.u32 %s41, 1
        %s213 = scalar_lea.sflag [#allocation4], %s212
        %s214 = sand.u32 %s41, 1
        %s215 = smul.addr %s214, 8
        %s216 = scalar_lea.vmem [#allocation3], %s215
        %p217 = pneg %p54
        %p218 = pneg %p51
        %p219 = pneg %p80
        %p220 = pneg %p77
        %p221 = scmp.lt.s32.totalorder %s26, 0
        %s222 = scalar_select %p221, %s26, 0
        %s223 = scalar_lea.vmem %s2, %s222
        %p224 = pneg %p106
        %p225 = pneg %p103
        %p226 = pneg %p134
        %p227 = pneg %p131
        %s228 = sand.u32 %s121, 1
        %s229 = scalar_lea.sflag [#allocation5], %s228
        %s230 = sand.u32 %s121, 1
        %s231 = smul.addr %s230, 8
        %s232 = scalar_lea.vmem [#allocation8], %s231
        %p233 = scmp.lt.s32.totalorder %s26, 0
        %s234 = scalar_select %p233, %s26, 0
        %s235 = scalar_lea.vmem %s2, %s234
        %p236 = scmp.eq.s32.totalorder %s26, 0
        // Predicated region
        $region41: #{tpu_custom_call.1} parent=31 // pred_check
          %p237 = pneg %p236
        $region42: #{tpu_custom_call.1} parent=31 // pred_check_branch
          %239 = sbr.rel (%p237) target = $region44
        $region43: #{tpu_custom_call.1} parent=31 // pred_region
          %v240 = vld [vmem:[%s203] sm:$0xff]
          %241 = vadd.xlane.f32.xlu0 %v240
          %v242 = vpop.xlane.xlu0 %241
          %v243 = vmul.f32 %v242, 0.03125
          %v244 = vsub.f32 %v240, %v243
          %v245 = vmul.f32 %v244, %v244
          %246 = vadd.xlane.f32.xlu0 %v245
          %v247 = vpop.xlane.xlu0 %246
          %v248 = vmul.f32 %v243, %v243
          %v249 = vmul.f32 %v248, 96.0
          %v250 = vsub.f32 %v247, %v249
          %v251 = vmul.f32 %v250, 0.03125
          %v252 = vadd.f32 %v251, 1e-05
          %v253 = vrsqrt.pop %v252
          %v254 = vmul.f32 %v244, %v253
          %255 = vst [vmem:[#allocation2] sm:$0xff] %v254
        $region44: #{tpu_custom_call.1} parent=31 // pred_fallthru
          _
        %v256 = vld [vmem:[#allocation2] sm:$0xff]
        %v257 = vld [vmem:[#allocation6] sm:$0xff]
        %v258 = vld [vmem:[#allocation6 + $0x8] sm:$0xff]
        %v259 = vld [vmem:[#allocation6 + $0x10] sm:$0xff]
        %v260 = vld [vmem:[#allocation6 + $0x18] sm:$0xff]
        %v261 = vld [vmem:[#allocation6 + $0x20] sm:$0xff]
        %v262 = vld [vmem:[#allocation6 + $0x28] sm:$0xff]
        %v263 = vld [vmem:[#allocation6 + $0x30] sm:$0xff]
        %v264 = vld [vmem:[#allocation6 + $0x38] sm:$0xff]
        %v265 = vld [vmem:[#allocation6 + $0x40] sm:$0xff]
        %v266 = vld [vmem:[#allocation6 + $0x48] sm:$0xff]
        %v267 = vld [vmem:[#allocation6 + $0x50] sm:$0xff]
        %v268 = vld [vmem:[#allocation6 + $0x58] sm:$0xff]
        %v269 = vld [vmem:[#allocation6 + $0x60] sm:$0xff]
        %v270 = vld [vmem:[#allocation6 + $0x68] sm:$0xff]
        %v271 = vld [vmem:[#allocation6 + $0x70] sm:$0xff]
        %v272 = vld [vmem:[#allocation6 + $0x78] sm:$0xff]
        %v273 = vld [vmem:[%s235] sm:$0x1]
        %v275 = vlaneseq
        %v276 = vshrl.u32 %v275, 7
        %v277 = vsub.s32 0, %v276
        %v278 = vrot.slane %v273, %v277
        %280 = vmatprep.subr.mxu0 0.0
        %281 = vmatpush1.msra.mxu0 %v272
        %282 = vmatprep.subr.mxu0 0.0
        %283 = vmatpush1.msra.mxu0 %v271
        %284 = vmatprep.subr.mxu0 0.0
        %285 = vmatpush1.msra.mxu0 %v270
        %286 = vmatprep.subr.mxu0 0.0
        %287 = vmatpush1.msra.mxu0 %v269
        %288 = vmatprep.subr.mxu0 0.0
        %289 = vmatpush1.msra.mxu0 %v268
        %290 = vmatprep.subr.mxu0 0.0
        %291 = vmatpush1.msra.mxu0 %v267
        %292 = vmatprep.subr.mxu0 0.0
        %293 = vmatpush1.msra.mxu0 %v266
        %294 = vmatprep.subr.mxu0 0.0
        %295 = vmatpush1.msra.mxu0 %v265
        %296 = vmatprep.subr.mxu0 0.0
        %297 = vmatpush1.msra.mxu0 %v264
        %298 = vmatprep.subr.mxu0 0.0
        %299 = vmatpush1.msra.mxu0 %v263
        %300 = vmatprep.subr.mxu0 0.0
        %301 = vmatpush1.msra.mxu0 %v262
        %302 = vmatprep.subr.mxu0 0.0
        %303 = vmatpush1.msra.mxu0 %v261
        %304 = vmatprep.subr.mxu0 0.0
        %305 = vmatpush1.msra.mxu0 %v260
        %306 = vmatprep.subr.mxu0 0.0
        %307 = vmatpush1.msra.mxu0 %v259
        %308 = vmatprep.subr.mxu0 0.0
        %309 = vmatpush1.msra.mxu0 %v258
        %310 = vmatprep.subr.mxu0 0.0
        %311 = vmatpush1.msra.mxu0 %v257
        %312 = vmatprep.subr.mxu0 0.0
        %313 = vmatpush2.msra.mxu0 0.0
        %314 = vmatprep.subr.mxu0 0.0
        %315 = vmatpush2.msra.mxu0 0.0
        %316 = vmatprep.subr.mxu0 0.0
        %317 = vmatpush2.msra.mxu0 0.0
        %318 = vmatprep.subr.mxu0 0.0
        %319 = vmatpush2.msra.mxu0 0.0
        %320 = vmatprep.subr.mxu0 0.0
        %321 = vmatpush2.msra.mxu0 0.0
        %322 = vmatprep.subr.mxu0 0.0
        %323 = vmatpush2.msra.mxu0 0.0
        %324 = vmatprep.subr.mxu0 0.0
        %325 = vmatpush2.msra.mxu0 0.0
        %326 = vmatprep.subr.mxu0 0.0
        %327 = vmatpush2.msra.mxu0 0.0
        %328 = vmatprep.subr.mxu0 0.0
        %329 = vmatpush2.msra.mxu0 0.0
        %330 = vmatprep.subr.mxu0 0.0
        %331 = vmatpush2.msra.mxu0 0.0
        %332 = vmatprep.subr.mxu0 0.0
        %333 = vmatpush2.msra.mxu0 0.0
        %334 = vmatprep.subr.mxu0 0.0
        %335 = vmatpush2.msra.mxu0 0.0
        %336 = vmatprep.subr.mxu0 0.0
        %337 = vmatpush2.msra.mxu0 0.0
        %338 = vmatprep.subr.mxu0 0.0
        %339 = vmatpush2.msra.mxu0 0.0
        %340 = vmatprep.subr.mxu0 0.0
        %341 = vmatpush2.msra.mxu0 0.0
        %342 = vmatprep.subr.mxu0 0.0
        %343 = vmatpush2.msra.mxu0 0.0
        %344 = vmatprep.mubr.f32.mxu0 0.0
        %345 = vmatmul.mubr.f32.gmra.mxu0 %v256
        %v346 = vpop.f32.mrf.mxu0
        %v347 = vadd.f32 %v278, %v346
        %v348 = vpop.f32.mrf.mxu0
        %349 = vdwg.mxu0
        %350 = vst [vmem:[%s232] sm:$0xff] %v347
        %s351 = sand.u32 %s121, 1
        %s352 = scalar_lea.sflag [#allocation5], %s351
        %s353 = sand.u32 %s121, 1
        %s354 = smul.addr %s353, 8
        %s355 = scalar_lea.vmem [#allocation8], %s354
        // Predicated region
        $region45: #{tpu_custom_call.1} parent=31 // pred_check
          %p356 = pneg %p131
        $region46: #{tpu_custom_call.1} parent=31 // pred_check_branch
          %358 = sbr.rel (%p356) target = $region48
        $region47: #{tpu_custom_call.1} parent=31 // pred_region
          %s360 = ssub.s32 128, 128
          %361 = vsyncadd %s352, %s360
          %s362 = sadd.s32 %s26, %s25
          %s363 = smul.addr %s362, 128
          %s364 = scalar_lea.hbm %s3, %s363
          %s366 = sshll.u32 %s355, 4
          %s367 = int_to_ptr.vmem [resolvable:$true] %s366
          %369 = dma.vmem_to_hbm [thread:$0]  %s367, 128, %s364, %s352
        $region48: #{tpu_custom_call.1} parent=31 // pred_fallthru
          _
      $region32: #{tpu_custom_call.1} parent=5 // pred_fallthru
        _
      %p370 = scmp.le.s32.totalorder 2, %s16
      // Predicated region
      $region49: #{tpu_custom_call.1} parent=5 // pred_check
        %p371 = pneg %p370
      $region50: #{tpu_custom_call.1} parent=5 // pred_check_branch
        %373 = sbr.rel (%p371) target = $region52
      $region51: #{tpu_custom_call.1} parent=5 // pred_region
        %s374 = ssub.s32 %s16, 2
        // Predicated region
        $region53: #{tpu_custom_call.1} parent=51 // pred_check
          %p375 = pneg %p137
        $region54: #{tpu_custom_call.1} parent=51 // pred_check_branch
          %377 = sbr.rel (%p375) target = $region56
        $region55: #{tpu_custom_call.1} parent=51 // pred_region
          %s378 = sand.u32 %s122, 1
          %s379 = scalar_lea.sflag [#allocation5], %s378
          %s380 = sand.u32 %s122, 1
          %s381 = smul.addr %s380, 8
          %s382 = scalar_lea.vmem [#allocation8], %s381
          %383 = dma.done %s379, 128
        $region56: #{tpu_custom_call.1} parent=51 // pred_fallthru
          _
      $region52: #{tpu_custom_call.1} parent=5 // pred_fallthru
        _
    $region6: #{tpu_custom_call.1} parent=1 // loop_footer
      %s20 = sadd.s32 1, %s16
    $region7: #{tpu_custom_call.1} parent=1 // loop_footer_branch
      %15 = sbr.rel target = $region3
    $region8: #{tpu_custom_call.1} parent=1 // loop_exit
      _
    %384 = vsyncpa [#allocation4], 1
    %s385 = scalar_lea.sflag [#allocation4], 1
    %386 = vsyncpa %s385, 1
    %387 = vsyncpa [#allocation7], 1
    %388 = vsyncpa [#allocation5], 1
    %s389 = scalar_lea.sflag [#allocation5], 1
    %390 = vsyncpa %s389, 1

</llo_original>
